<compile_context>
chip_gen: v7x
topology: tpu7x:2x2x1
jax: 0.10.0
libtpu: 0.0.40
codegen_flags: <defaults>
</compile_context>

<pallas_src>
import math

import numpy as np
import jax
import jax.numpy as jnp
from jax.experimental import pallas as pl
from jax.experimental.pallas import tpu as pltpu  # noqa: F401  (TPU backend)

# ----------------------------- module hyper-params ---------------------------
D_MODEL = 128          # d_model (multiple of 128 -> full lane utilization)
MAX_LEN = 64           # max_len of the registered pe buffer
DROPOUT_P = 0.1        # unused at inference (Dropout == identity)


# ------------------------------- Pallas kernel -------------------------------

def _pe_add_kernel(x_ref, pe_ref, o_ref):
    # x_ref / o_ref: (B, T, D) whole-array block; pe_ref: (T, D) rows 0..T-1.
    # (T, D) broadcasts against (B, T, D) under normal numpy rules.
    o_ref[...] = x_ref[...] + pe_ref[...]


def positional_encoding_forward(x, pe_table):
    """x: (B, T, D) float32, pe_table: (MAX_LEN, D) float32 -> (B, T, D)."""
    B, T, D = x.shape
    max_len, d = pe_table.shape
    assert T <= max_len and D == d

    return pl.pallas_call(
        _pe_add_kernel,
        grid=(1,),                                        # single grid step
        in_specs=[
            pl.BlockSpec((B, T, D), lambda i: (0, 0, 0)),  # whole x in one block
            pl.BlockSpec((T, D), lambda i: (0, 0)),        # pe[:T, :] via BlockSpec
        ],
        out_specs=pl.BlockSpec((B, T, D), lambda i: (0, 0, 0)),
        out_shape=jax.ShapeDtypeStruct((B, T, D), x.dtype),
        input_output_aliases={0: 0},                      # write result into x's buffer
    )(x, pe_table)


# Donate x so the pallas-level alias is actually usable (no extra HBM alloc).
_pe_forward = jax.jit(positional_encoding_forward, donate_argnums=(0,))


# ----------------------- PE table (matches PyTorch init) ---------------------

def positional_encoding_table(d_model, max_len):
    position = np.arange(max_len, dtype=np.float64)[:, None]
    div_term = np.exp(np.arange(0, d_model, 2, dtype=np.float64)
                      * (-math.log(10000.0) / d_model))
    pe = np.zeros((max_len, d_model), dtype=np.float32)
    pe[:, 0::2] = np.sin(position * div_term)
    pe[:, 1::2] = np.cos(position * div_term)
    return jnp.asarray(pe)                                # stored as (max_len, d_model)


# ------------------------------------ main ------------------------------------

if __name__ == "__main__":
    key = jax.random.PRNGKey(0)

    B, T = 2, 40                                          # T multiple of 8 sublanes
    x = jax.random.normal(key, (B, T, D_MODEL), jnp.float32)
    pe_table = positional_encoding_table(D_MODEL, MAX_LEN)

    # Reference (PyTorch semantics: x + pe[:, :T, :]); materialize BEFORE the
    # kernel call since x's buffer is donated to the kernel output.
    ref = jax.block_until_ready(x + pe_table[None, :T, :])

    out = _pe_forward(x, pe_table)
    out = jax.block_until_ready(out)

    assert out.shape == (B, T, D_MODEL), out.shape
    assert bool(jnp.all(jnp.isfinite(out)))
    np.testing.assert_allclose(np.asarray(out), np.asarray(ref), rtol=1e-6, atol=1e-6)

    print("KERNEL_OK")
</pallas_src>

<mosaic_0001>
module attributes {stable_mosaic.version = 11 : i64} {
  func.func @_pe_add_kernel(%arg0: i32, %arg1: memref<2x40x128xf32, #tpu.memory_space<vmem>>, %arg2: memref<40x128xf32, #tpu.memory_space<vmem>>, %arg3: memref<2x40x128xf32, #tpu.memory_space<vmem>>) attributes {dimension_semantics = [#tpu.dimension_semantics<arbitrary>], iteration_bounds = array<i64: 1>, scalar_prefetch = 0 : i64, scratch_operands = 0 : i64, tpu.core_type = #tpu.core_type<tc>, window_params = [{pipeline_mode = #tpu.pipeline_mode<synchronous>, transform_indices = @transform_0, window_bounds = array<i64: 2, 40, 128>}, {transform_indices = @transform_1, window_bounds = array<i64: 40, 128>}, {pipeline_mode = #tpu.pipeline_mode<synchronous>, transform_indices = @transform_2, window_bounds = array<i64: 2, 40, 128>}]} {
    %c0 = arith.constant 0 : index
    %c0_0 = arith.constant 0 : index
    %c0_1 = arith.constant 0 : index
    %0 = vector.load %arg1[%c0, %c0_0, %c0_1] : memref<2x40x128xf32, #tpu.memory_space<vmem>>, vector<2x40x128xf32>
    %c0_2 = arith.constant 0 : index
    %c0_3 = arith.constant 0 : index
    %1 = vector.load %arg2[%c0_2, %c0_3] : memref<40x128xf32, #tpu.memory_space<vmem>>, vector<40x128xf32>
    %2 = vector.shape_cast %1 : vector<40x128xf32> to vector<1x40x128xf32>
    %3 = vector.broadcast %2 : vector<1x40x128xf32> to vector<2x40x128xf32>
    %4 = arith.addf %0, %3 : vector<2x40x128xf32>
    %c0_4 = arith.constant 0 : index
    %c0_5 = arith.constant 0 : index
    %c0_6 = arith.constant 0 : index
    %5 = vector.load %arg3[%c0_4, %c0_5, %c0_6] : memref<2x40x128xf32, #tpu.memory_space<vmem>>, vector<2x40x128xf32>
    tpu.vector_store %arg3[%c0_4, %c0_5, %c0_6], %4 {strides = array<i32>} : memref<2x40x128xf32, #tpu.memory_space<vmem>>, vector<2x40x128xf32>,
    return
  }
  func.func @transform_0(%arg0: i32) -> (i32, i32, i32) {
    %c0_i32 = arith.constant 0 : i32
    %c0_i32_0 = arith.constant 0 : i32
    %c0_i32_1 = arith.constant 0 : i32
    %c0_i32_2 = arith.constant 0 : i32
    return %c0_i32, %c0_i32_0, %c0_i32_1 : i32, i32, i32
  }
  func.func @transform_1(%arg0: i32) -> (i32, i32) {
    %c0_i32 = arith.constant 0 : i32
    %c0_i32_0 = arith.constant 0 : i32
    %c0_i32_1 = arith.constant 0 : i32
    return %c0_i32, %c0_i32_0 : i32, i32
  }
  func.func @transform_2(%arg0: i32) -> (i32, i32, i32) {
    %c0_i32 = arith.constant 0 : i32
    %c0_i32_0 = arith.constant 0 : i32
    %c0_i32_1 = arith.constant 0 : i32
    %c0_i32_2 = arith.constant 0 : i32
    return %c0_i32, %c0_i32_0, %c0_i32_1 : i32, i32, i32
  }
}

</mosaic_0001>

<llo_original>
// kernel: positional_encoding_forward.1
$region0: #{positional_encoding_forward.1}
  #allocation0 [shape = 'u32[]', space=smem, size = 0x4, offset = 0x4, fixed_abs, tag = 'smem constant byte address 0x4 - core index']
  #allocation1 [shape = 'u32[144,128]{1,0:T(1,128)}', space=vmem, size = 0x12000, scoped, tag = 'internal scratch']
  %s0 = inlined_call_operand.hbm [shape: f32[2,40,128], index: 0, kind: input, shape index: {}, may-alias: {0,2}]
  %s1 = inlined_call_operand.hbm [shape: f32[64,128], index: 1, kind: input, shape index: {}]
  %s2 = inlined_call_operand.hbm [shape: f32[2,40,128], index: 2, kind: output, shape index: {}, may-alias: {0,2}]
  %s3 = sld [smem:[#allocation0]]
  $region26: #{positional_encoding_forward.1} parent=0
    _
  %s5 = ssub.s32 1, %s3
  %s6 = scalar_select 0, %s5, %s3
  $region1: #{positional_encoding_forward.1} parent=0
    #allocation2 [shape = 'u8[40960]{0}', space=vmem, size = 0xa000, scoped, tag = 'input window, operand 0, single buffered']
    #allocation3 [shape = 's32[1]{0}', space=sflag, size = 0x4, scoped, tag = 'scoped memory for positional_encoding_forward.1']
    #allocation4 [shape = 's32[1]{0}', space=sflag, size = 0x4, scoped, tag = 'scoped memory for positional_encoding_forward.1']
    #allocation5 [shape = 'u8[20480]{0}', space=vmem, size = 0x5000, scoped, tag = 'input window, operand 1, single buffered']
    #allocation6 [shape = 's32[1]{0}', space=sflag, size = 0x4, scoped, tag = 'scoped memory for positional_encoding_forward.1']
    #allocation7 [shape = 'u8[40960]{0}', space=vmem, size = 0xa000, scoped, tag = 'output window, operand 0, single buffered']
    %7 = vsyncpa [#allocation3], 0
    %8 = vsyncpa [#allocation6], 0
    %9 = vsyncpa [#allocation4], 0
    // Predicated region
    $region2: #{positional_encoding_forward.1} parent=1 // pred_check
      _
    $region3: #{positional_encoding_forward.1} parent=1 // pred_check_branch
      %11 = sbr.rel (0) target = $region5
    $region4: #{positional_encoding_forward.1} parent=1 // pred_region
      %s13 = ssub.s32 1280, 1280
      %14 = vsyncadd [#allocation3], %s13
      %s15 = sshll.u32 [#allocation2], 4
      %s16 = int_to_ptr.vmem [resolvable:$true] %s15
      %21 = dma.hbm_to_vmem [thread:$0]  %s0, 1280, %s16, [#allocation3], 128, 128, 8
    $region5: #{positional_encoding_forward.1} parent=1 // pred_fallthru
      _
    // Predicated region
    $region6: #{positional_encoding_forward.1} parent=1 // pred_check
      _
    $region7: #{positional_encoding_forward.1} parent=1 // pred_check_branch
      %23 = sbr.rel (0) target = $region9
    $region8: #{positional_encoding_forward.1} parent=1 // pred_region
      %s25 = ssub.s32 640, 640
      %26 = vsyncadd [#allocation6], %s25
      %s27 = sshll.u32 [#allocation5], 4
      %s28 = int_to_ptr.vmem [resolvable:$true] %s27
      %33 = dma.hbm_to_vmem [thread:$0]  %s1, 640, %s28, [#allocation6], 128, 128, 8
    $region9: #{positional_encoding_forward.1} parent=1 // pred_fallthru
      _
    // Predicated region
    $region10: #{positional_encoding_forward.1} parent=1 // pred_check
      _
    $region11: #{positional_encoding_forward.1} parent=1 // pred_check_branch
      %35 = sbr.rel (0) target = $region13
    $region12: #{positional_encoding_forward.1} parent=1 // pred_region
      %36 = dma.done [#allocation3], 1280
    $region13: #{positional_encoding_forward.1} parent=1 // pred_fallthru
      _
    // Predicated region
    $region14: #{positional_encoding_forward.1} parent=1 // pred_check
      _
    $region15: #{positional_encoding_forward.1} parent=1 // pred_check_branch
      %38 = sbr.rel (0) target = $region17
    $region16: #{positional_encoding_forward.1} parent=1 // pred_region
      %39 = dma.done [#allocation6], 640
    $region17: #{positional_encoding_forward.1} parent=1 // pred_fallthru
      _
    %v40 = vld [vmem:[#allocation2] sm:$0xff]
    %v41 = vld [vmem:[#allocation2 + $0x8] sm:$0xff]
    %v42 = vld [vmem:[#allocation2 + $0x10] sm:$0xff]
    %v43 = vld [vmem:[#allocation2 + $0x18] sm:$0xff]
    %v44 = vld [vmem:[#allocation2 + $0x20] sm:$0xff]
    %v45 = vld [vmem:[#allocation2 + $0x28] sm:$0xff]
    %v46 = vld [vmem:[#allocation2 + $0x30] sm:$0xff]
    %v47 = vld [vmem:[#allocation2 + $0x38] sm:$0xff]
    %v48 = vld [vmem:[#allocation2 + $0x40] sm:$0xff]
    %v49 = vld [vmem:[#allocation2 + $0x48] sm:$0xff]
    %v50 = vld [vmem:[#allocation5] sm:$0xff]
    %v51 = vld [vmem:[#allocation5 + $0x8] sm:$0xff]
    %v52 = vld [vmem:[#allocation5 + $0x10] sm:$0xff]
    %v53 = vld [vmem:[#allocation5 + $0x18] sm:$0xff]
    %v54 = vld [vmem:[#allocation5 + $0x20] sm:$0xff]
    %v55 = vadd.f32 %v40, %v50
    %v56 = vadd.f32 %v41, %v51
    %v57 = vadd.f32 %v42, %v52
    %v58 = vadd.f32 %v43, %v53
    %v59 = vadd.f32 %v44, %v54
    %v60 = vadd.f32 %v45, %v50
    %v61 = vadd.f32 %v46, %v51
    %v62 = vadd.f32 %v47, %v52
    %v63 = vadd.f32 %v48, %v53
    %v64 = vadd.f32 %v49, %v54
    %65 = vst [vmem:[#allocation7] sm:$0xff] %v55
    %66 = vst [vmem:[#allocation7 + $0x8] sm:$0xff] %v56
    %67 = vst [vmem:[#allocation7 + $0x10] sm:$0xff] %v57
    %68 = vst [vmem:[#allocation7 + $0x18] sm:$0xff] %v58
    %69 = vst [vmem:[#allocation7 + $0x20] sm:$0xff] %v59
    %70 = vst [vmem:[#allocation7 + $0x28] sm:$0xff] %v60
    %71 = vst [vmem:[#allocation7 + $0x30] sm:$0xff] %v61
    %72 = vst [vmem:[#allocation7 + $0x38] sm:$0xff] %v62
    %73 = vst [vmem:[#allocation7 + $0x40] sm:$0xff] %v63
    %74 = vst [vmem:[#allocation7 + $0x48] sm:$0xff] %v64
    // Predicated region
    $region18: #{positional_encoding_forward.1} parent=1 // pred_check
      _
    $region19: #{positional_encoding_forward.1} parent=1 // pred_check_branch
      %76 = sbr.rel (0) target = $region21
    $region20: #{positional_encoding_forward.1} parent=1 // pred_region
      %s78 = ssub.s32 1280, 1280
      %79 = vsyncadd [#allocation4], %s78
      %s80 = sshll.u32 [#allocation7], 4
      %s81 = int_to_ptr.vmem [resolvable:$true] %s80
      %86 = dma.vmem_to_hbm [thread:$0]  %s81, 1280, %s2, [#allocation4], 128, 128, 8
    $region21: #{positional_encoding_forward.1} parent=1 // pred_fallthru
      _
    // Predicated region
    $region22: #{positional_encoding_forward.1} parent=1 // pred_check
      _
    $region23: #{positional_encoding_forward.1} parent=1 // pred_check_branch
      %88 = sbr.rel (0) target = $region25
    $region24: #{positional_encoding_forward.1} parent=1 // pred_region
      %89 = dma.done [#allocation4], 1280
    $region25: #{positional_encoding_forward.1} parent=1 // pred_fallthru
      _
    %90 = vsyncpa [#allocation3], 1
    %91 = vsyncpa [#allocation6], 1
    %92 = vsyncpa [#allocation4], 1

</llo_original>
